<compile_context>
chip_gen: v7x
topology: tpu7x:2x2x1
jax: 0.10.0
libtpu: 0.0.40
codegen_flags: <defaults>
</compile_context>

<pallas_src>
import functools

import jax
import jax.numpy as jnp
import numpy as np
from jax.experimental import pallas as pl
from jax.experimental.pallas import tpu as pltpu

EPS = 1e-3  # ultralytics Conv uses BatchNorm2d(eps=0.001)


def _silu_kernel(x):
    # x * sigmoid(x); the divide runs on the otherwise-idle EUP slot.
    return x * pl.reciprocal(1.0 + jnp.exp(-x), approx=True)


def _silu_ref(x):
    return x * jax.nn.sigmoid(x)


# -----------------------------------------------------------------------------
# Fused C3 kernel: one grid step = one batch image, all intermediates in VMEM.
# Weights are pre-folded (BN scale), pre-transposed to (cout, cin[*9]) and
# pre-cast to bf16 so every conv is one weight-stationary MXU matmul
# (cout, K) @ (K, H*W) with f32 accumulation.
# -----------------------------------------------------------------------------
def _c3_kernel(x_ref, w12_ref, b12_ref, wb1_ref, bb1_ref, wb2_ref, bb2_ref,
               wc3_ref, bc3_ref, mask_ref, o_ref, col_ref, cat_ref,
               *, H, W, c_mid, n_blocks, shortcut):
    hw = H * W
    bf16 = jnp.bfloat16
    xb = x_ref[0].astype(bf16)                        # (C1, H*W), spatial on lanes

    # cv1 & cv2 fused: one stacked 1x1 conv (+ folded BN) + SiLU.
    a12 = _silu_kernel(
        jnp.dot(w12_ref[...], xb, preferred_element_type=jnp.float32)
        + b12_ref[...])                               # (2c_, HW) f32

    # Rows [c_:2c_] (= a2 = cv2(x)) go straight into the cv3 operand slab; the
    # first half is overwritten with the final bottleneck output below.
    cat_ref[...] = a12.astype(bf16)

    y = a12[0:c_mid]                                  # a1 = cv1(x), f32
    for i in range(n_blocks):                         # Bottleneck(c_, c_, e=1.0)
        # Bottleneck.cv1 : 1x1 conv + BN + SiLU
        t = _silu_kernel(
            jnp.dot(wb1_ref[i], y.astype(bf16),
                    preferred_element_type=jnp.float32) + bb1_ref[i])

        # Bottleneck.cv2 : 3x3 conv (stride 1, pad 1) as ONE im2col matmul.
        # Pack the 9 spatially shifted (rolled + boundary-masked) copies of t
        # along the contraction axis in a VMEM scratch slab.
        mrow = 0
        for kh in range(3):
            for kw in range(3):
                tap = kh * 3 + kw
                s = (kh - 1) * W + (kw - 1)           # shift in flat spatial idx
                if s == 0:
                    p = t
                else:
                    p = (pltpu.roll(t, shift=(-s) % hw, axis=1)
                         * mask_ref[pl.ds(mrow, 1), :])   # zero-padding boundary
                    mrow += 1
                col_ref[pl.ds(tap * c_mid, c_mid), :] = p
        z = jnp.dot(wb2_ref[i], col_ref[...].astype(bf16),
                    preferred_element_type=jnp.float32) + bb2_ref[i]
        c = _silu_kernel(z)
        y = y + c if shortcut else c

    # cat([y, a2], channel) + cv3 as a single K=2c_ matmul.
    cat_ref[pl.ds(0, c_mid), :] = y.astype(bf16)
    out = _silu_kernel(
        jnp.dot(wc3_ref[...], cat_ref[...],
                preferred_element_type=jnp.float32) + bc3_ref[...])
    o_ref[...] = out.reshape(o_ref.shape).astype(o_ref.dtype)


# -----------------------------------------------------------------------------
# Wrapper: fold BN scale, stack cv1/cv2, build the im2col weight layout,
# pre-cast weights to bf16, build the (8, HW) boundary masks and launch one
# fused pallas_call over the batch.
# -----------------------------------------------------------------------------
def _prep_params(params):
    bf16 = jnp.bfloat16

    def fold1(p):          # 1x1 conv: (cin, cout) -> scaled, transposed (cout, cin)
        return (p["w"] * p["scale"].reshape(1, -1)).T

    w12 = jnp.concatenate([fold1(params["cv1"]), fold1(params["cv2"])],
                          axis=0).astype(bf16)                        # (2c_, c1)
    b12 = jnp.concatenate([params["cv1"]["bias"].reshape(-1, 1),
                           params["cv2"]["bias"].reshape(-1, 1)], axis=0)

    wc3 = fold1(params["cv3"]).astype(bf16)                           # (c2, 2c_)
    bc3 = params["cv3"]["bias"].reshape(-1, 1)

    wb1 = jnp.stack([fold1(b["cv1"]) for b in params["m"]]).astype(bf16)
    bb1 = jnp.stack([b["cv1"]["bias"].reshape(-1, 1) for b in params["m"]])

    def fold3(b):          # 3x3 HWIO (3,3,ci,co) -> (co, 9*ci), tap-major (kh,kw)
        w = b["cv2"]["w"] * b["cv2"]["scale"].reshape(1, 1, 1, -1)
        return jnp.transpose(w, (3, 0, 1, 2)).reshape(w.shape[3], -1)

    wb2 = jnp.stack([fold3(b) for b in params["m"]]).astype(bf16)     # (n,co,9ci)
    bb2 = jnp.stack([b["cv2"]["bias"].reshape(-1, 1) for b in params["m"]])
    return w12, b12, wb1, bb1, wb2, bb2, wc3, bc3


def _vmem_limit_bytes():
    # Generation-aware: ~80% of physical VMEM (v5e/v6e: 128 MiB -> ~102 MiB,
    # v7x: 64 MiB -> ~51 MiB).  Conservative fallback if the query fails.
    try:
        cap = int(pltpu.get_tpu_info().vmem_capacity_bytes)
        if cap > 0:
            return int(cap * 0.8)
    except Exception:
        pass
    return 48 * 1024 * 1024


def c3_forward_pallas(params, x_nchw, shortcut=True):
    n, c1, h, w = x_nchw.shape
    hw = h * w
    c_ = params["cv1"]["w"].shape[1]
    c2 = params["cv3"]["w"].shape[1]
    nb = len(params["m"])

    w12, b12, wb1, bb1, wb2, bb2, wc3, bc3 = _prep_params(params)

    # Zero-padding boundary masks for the 8 non-center conv taps over the
    # flattened spatial axis (compile-time constants; dense (8, HW) slab).
    rows, cols = np.arange(hw) // w, np.arange(hw) % w
    mask_np = np.zeros((8, hw), np.float32)
    mrow = 0
    for kh in range(3):
        for kw in range(3):
            if kh == 1 and kw == 1:
                continue
            dh, dw = kh - 1, kw - 1
            mask_np[mrow] = ((rows + dh >= 0) & (rows + dh < h) &
                             (cols + dw >= 0) & (cols + dw < w))
            mrow += 1
    masks = jnp.asarray(mask_np)

    x2 = x_nchw.reshape(n, c1, hw)                     # free: merges trailing dims

    def _const_spec(a):
        zeros = (0,) * a.ndim
        return pl.BlockSpec(a.shape, lambda i, z=zeros: z)

    operands = (x2, w12, b12, wb1, bb1, wb2, bb2, wc3, bc3, masks)
    in_specs = [pl.BlockSpec((1, c1, hw), lambda i: (i, 0, 0))]
    in_specs += [_const_spec(a) for a in operands[1:]]

    out = pl.pallas_call(
        functools.partial(_c3_kernel, H=h, W=w, c_mid=c_, n_blocks=nb,
                          shortcut=shortcut),
        out_shape=jax.ShapeDtypeStruct((n, c2, hw), x_nchw.dtype),
        grid_spec=pltpu.PrefetchScalarGridSpec(
            num_scalar_prefetch=0,
            grid=(n,),
            in_specs=in_specs,
            out_specs=pl.BlockSpec((1, c2, hw), lambda i: (i, 0, 0)),
            scratch_shapes=[
                pltpu.VMEM((9 * c_, hw), jnp.float32),    # im2col slab (K axis)
                pltpu.VMEM((2 * c_, hw), jnp.bfloat16),   # [y; a2] slab for cv3
            ],
        ),
        compiler_params=pltpu.CompilerParams(
            dimension_semantics=("parallel",),
            vmem_limit_bytes=_vmem_limit_bytes(),
        ),
    )(*operands)
    return out.reshape(n, c2, h, w)


# -----------------------------------------------------------------------------
# Deterministic parameter construction (synthetic; BN folded to scale/bias)
# -----------------------------------------------------------------------------
def _fold_bn(gamma, beta, mean, var):
    scale = gamma / jnp.sqrt(var + EPS)
    bias = beta - mean * scale
    return scale.reshape(1, -1), bias.reshape(1, -1)


def make_conv_params(key, cin, cout, k):
    kw_, k1, k2, k3, k4 = jax.random.split(key, 5)
    if k == 1:
        w = 0.2 * jax.random.normal(kw_, (cin, cout), jnp.float32)
    else:
        w = 0.2 * jax.random.normal(kw_, (k, k, cin, cout), jnp.float32)  # HWIO
    gamma = 1.0 + 0.1 * jax.random.normal(k1, (cout,), jnp.float32)
    beta = 0.1 * jax.random.normal(k2, (cout,), jnp.float32)
    mean = 0.1 * jax.random.normal(k3, (cout,), jnp.float32)
    var = jax.random.uniform(k4, (cout,), jnp.float32, minval=0.5, maxval=1.5)
    scale, bias = _fold_bn(gamma, beta, mean, var)
    return {"w": w, "scale": scale, "bias": bias}


def init_c3_params(key, c1, c2, n=1, e=0.5):
    c_ = int(c2 * e)
    keys = jax.random.split(key, 3 + 2 * n)
    params = {
        "cv1": make_conv_params(keys[0], c1, c_, 1),
        "cv2": make_conv_params(keys[1], c1, c_, 1),
        "cv3": make_conv_params(keys[2], 2 * c_, c2, 1),
        "m": [],
    }
    for i in range(n):
        params["m"].append({
            "cv1": make_conv_params(keys[3 + 2 * i], c_, c_, 1),  # k=(1,1)
            "cv2": make_conv_params(keys[4 + 2 * i], c_, c_, 3),  # k=(3,3)
        })
    return params


# -----------------------------------------------------------------------------
# Pure-JAX reference (for correctness check only)
# -----------------------------------------------------------------------------
def _conv_ref(x, w, scale, bias, k):
    if k == 1:
        w4 = w.reshape(1, 1, w.shape[0], w.shape[1])
        pad = "VALID"
    else:
        w4 = w
        pad = ((1, 1), (1, 1))
    y = jax.lax.conv_general_dilated(
        x, w4, window_strides=(1, 1), padding=pad,
        dimension_numbers=("NHWC", "HWIO", "NHWC"),
        precision=jax.lax.Precision.HIGHEST)
    y = y * scale.reshape(1, 1, 1, -1) + bias.reshape(1, 1, 1, -1)
    return _silu_ref(y)


def c3_forward_ref(params, x_nchw, shortcut=True):
    x = jnp.transpose(x_nchw, (0, 2, 3, 1))
    a1 = _conv_ref(x, params["cv1"]["w"], params["cv1"]["scale"], params["cv1"]["bias"], 1)
    a2 = _conv_ref(x, params["cv2"]["w"], params["cv2"]["scale"], params["cv2"]["bias"], 1)
    y = a1
    for blk in params["m"]:
        t = _conv_ref(y, blk["cv1"]["w"], blk["cv1"]["scale"], blk["cv1"]["bias"], 1)
        c = _conv_ref(t, blk["cv2"]["w"], blk["cv2"]["scale"], blk["cv2"]["bias"], 3)
        y = y + c if shortcut else c
    cat = jnp.concatenate([y, a2], axis=-1)
    out = _conv_ref(cat, params["cv3"]["w"], params["cv3"]["scale"], params["cv3"]["bias"], 1)
    return jnp.transpose(out, (0, 3, 1, 2))


if __name__ == "__main__":
    key = jax.random.PRNGKey(0)
    kx, kp = jax.random.split(key)

    N, C1, C2, H, W = 2, 8, 8, 16, 16  # C3(c1=8, c2=8, n=1, shortcut=True, e=0.5)
    x = jax.random.normal(kx, (N, C1, H, W), jnp.float32)  # NCHW like PyTorch
    params = init_c3_params(kp, C1, C2, n=1, e=0.5)

    fwd = jax.jit(c3_forward_pallas)
    out = jax.block_until_ready(fwd(params, x))
    assert out.shape == (N, C2, H, W)

    ref = jax.block_until_ready(c3_forward_ref(params, x))
    # bf16 MXU operands (f32 accumulation) + approx-EUP sigmoid vs a
    # Precision.HIGHEST f32 reference -> tolerance loosened accordingly.
    np.testing.assert_allclose(np.asarray(out), np.asarray(ref),
                               rtol=5e-2, atol=5e-2)

    print("KERNEL_OK")
</pallas_src>

<mosaic_0001>
module attributes {stable_mosaic.version = 11 : i64} {
  func.func @_c3_kernel(%arg0: i32, %arg1: memref<1x8x256xf32, #tpu.memory_space<vmem>>, %arg2: memref<8x8xbf16, #tpu.memory_space<vmem>>, %arg3: memref<8x1xf32, #tpu.memory_space<vmem>>, %arg4: memref<1x4x4xbf16, #tpu.memory_space<vmem>>, %arg5: memref<1x4x1xf32, #tpu.memory_space<vmem>>, %arg6: memref<1x4x36xbf16, #tpu.memory_space<vmem>>, %arg7: memref<1x4x1xf32, #tpu.memory_space<vmem>>, %arg8: memref<8x8xbf16, #tpu.memory_space<vmem>>, %arg9: memref<8x1xf32, #tpu.memory_space<vmem>>, %arg10: memref<8x256xf32, #tpu.memory_space<vmem>>, %arg11: memref<1x8x256xf32, #tpu.memory_space<vmem>>, %arg12: memref<36x256xf32, #tpu.memory_space<vmem>>, %arg13: memref<8x256xbf16, #tpu.memory_space<vmem>>) attributes {dimension_semantics = [#tpu.dimension_semantics<parallel>], iteration_bounds = array<i64: 2>, scalar_prefetch = 0 : i64, scratch_operands = 2 : i64, tpu.core_type = #tpu.core_type<tc>, window_params = [{transform_indices = @transform_0, window_bounds = array<i64: 1, 8, 256>}, {pipeline_mode = #tpu.pipeline_mode<synchronous>, transform_indices = @transform_1, window_bounds = array<i64: 8, 8>}, {pipeline_mode = #tpu.pipeline_mode<synchronous>, transform_indices = @transform_2, window_bounds = array<i64: 8, 1>}, {pipeline_mode = #tpu.pipeline_mode<synchronous>, transform_indices = @transform_3, window_bounds = array<i64: 1, 4, 4>}, {pipeline_mode = #tpu.pipeline_mode<synchronous>, transform_indices = @transform_4, window_bounds = array<i64: 1, 4, 1>}, {pipeline_mode = #tpu.pipeline_mode<synchronous>, transform_indices = @transform_5, window_bounds = array<i64: 1, 4, 36>}, {pipeline_mode = #tpu.pipeline_mode<synchronous>, transform_indices = @transform_6, window_bounds = array<i64: 1, 4, 1>}, {pipeline_mode = #tpu.pipeline_mode<synchronous>, transform_indices = @transform_7, window_bounds = array<i64: 8, 8>}, {pipeline_mode = #tpu.pipeline_mode<synchronous>, transform_indices = @transform_8, window_bounds = array<i64: 8, 1>}, {pipeline_mode = #tpu.pipeline_mode<synchronous>, transform_indices = @transform_9, window_bounds = array<i64: 8, 256>}, {transform_indices = @transform_10, window_bounds = array<i64: 1, 8, 256>}]} {
    %c0 = arith.constant 0 : index
    %c0_0 = arith.constant 0 : index
    %c0_1 = arith.constant 0 : index
    %0 = vector.load %arg1[%c0, %c0_0, %c0_1] : memref<1x8x256xf32, #tpu.memory_space<vmem>>, vector<1x8x256xf32>
    %1 = vector.shape_cast %0 : vector<1x8x256xf32> to vector<8x256xf32>
    %2 = arith.truncf %1 : vector<8x256xf32> to vector<8x256xbf16>
    %c0_2 = arith.constant 0 : index
    %c0_3 = arith.constant 0 : index
    %3 = vector.load %arg2[%c0_2, %c0_3] : memref<8x8xbf16, #tpu.memory_space<vmem>>, vector<8x8xbf16>
    %cst = arith.constant dense<0.000000e+00> : vector<8x256xf32>
    %4 = tpu.matmul %3, %2, %cst {dimension_numbers = #tpu.dot_dimension_numbers<[1], [0], [0], [1], [0, 0, 1, 1], [], []>} : vector<8x8xbf16>, vector<8x256xbf16>, vector<8x256xf32> -> vector<8x256xf32>
    %c0_4 = arith.constant 0 : index
    %c0_5 = arith.constant 0 : index
    %5 = vector.load %arg3[%c0_4, %c0_5] : memref<8x1xf32, #tpu.memory_space<vmem>>, vector<8x1xf32>
    %6 = vector.broadcast %5 : vector<8x1xf32> to vector<8x256xf32>
    %7 = arith.addf %4, %6 : vector<8x256xf32>
    %cst_6 = arith.constant 0.000000e+00 : f32
    %8 = vector.broadcast %cst_6 : f32 to vector<8x256xf32>
    %9 = arith.subf %8, %7 : vector<8x256xf32>
    %10 = math.exp %9 : vector<8x256xf32>
    %cst_7 = arith.constant 1.000000e+00 : f32
    %11 = vector.broadcast %cst_7 : f32 to vector<8x256xf32>
    %12 = arith.addf %11, %10 : vector<8x256xf32>
    %13 = tpu.reciprocal %12 {approx = true} : vector<8x256xf32> -> vector<8x256xf32>
    %14 = arith.mulf %7, %13 : vector<8x256xf32>
    %15 = arith.truncf %14 : vector<8x256xf32> to vector<8x256xbf16>
    %c0_8 = arith.constant 0 : index
    %c0_9 = arith.constant 0 : index
    %16 = vector.load %arg13[%c0_8, %c0_9] : memref<8x256xbf16, #tpu.memory_space<vmem>>, vector<8x256xbf16>
    tpu.vector_store %arg13[%c0_8, %c0_9], %15 {strides = array<i32>} : memref<8x256xbf16, #tpu.memory_space<vmem>>, vector<8x256xbf16>,
    %17 = vector.extract_strided_slice %14 {offsets = [0, 0], sizes = [4, 256], strides = [1, 1]} : vector<8x256xf32> to vector<4x256xf32>
    %c0_10 = arith.constant 0 : index
    %c0_11 = arith.constant 0 : index
    %c0_12 = arith.constant 0 : index
    %18 = vector.load %arg4[%c0_10, %c0_11, %c0_12] : memref<1x4x4xbf16, #tpu.memory_space<vmem>>, vector<1x4x4xbf16>
    %19 = vector.shape_cast %18 : vector<1x4x4xbf16> to vector<4x4xbf16>
    %20 = arith.truncf %17 : vector<4x256xf32> to vector<4x256xbf16>
    %cst_13 = arith.constant dense<0.000000e+00> : vector<4x256xf32>
    %21 = tpu.matmul %19, %20, %cst_13 {dimension_numbers = #tpu.dot_dimension_numbers<[1], [0], [0], [1], [0, 0, 1, 1], [], []>} : vector<4x4xbf16>, vector<4x256xbf16>, vector<4x256xf32> -> vector<4x256xf32>
    %c0_14 = arith.constant 0 : index
    %c0_15 = arith.constant 0 : index
    %c0_16 = arith.constant 0 : index
    %22 = vector.load %arg5[%c0_14, %c0_15, %c0_16] : memref<1x4x1xf32, #tpu.memory_space<vmem>>, vector<1x4x1xf32>
    %23 = vector.shape_cast %22 : vector<1x4x1xf32> to vector<4x1xf32>
    %24 = vector.broadcast %23 : vector<4x1xf32> to vector<4x256xf32>
    %25 = arith.addf %21, %24 : vector<4x256xf32>
    %cst_17 = arith.constant 0.000000e+00 : f32
    %26 = vector.broadcast %cst_17 : f32 to vector<4x256xf32>
    %27 = arith.subf %26, %25 : vector<4x256xf32>
    %28 = math.exp %27 : vector<4x256xf32>
    %cst_18 = arith.constant 1.000000e+00 : f32
    %29 = vector.broadcast %cst_18 : f32 to vector<4x256xf32>
    %30 = arith.addf %29, %28 : vector<4x256xf32>
    %31 = tpu.reciprocal %30 {approx = true} : vector<4x256xf32> -> vector<4x256xf32>
    %32 = arith.mulf %25, %31 : vector<4x256xf32>
    %c17_i32 = arith.constant 17 : i32
    %33 = tpu.dynamic_rotate %32 by %c17_i32 dim 1 : vector<4x256xf32>, i32 -> vector<4x256xf32>
    %c0_19 = arith.constant 0 : index
    %c0_20 = arith.constant 0 : index
    %34 = vector.load %arg10[%c0_19, %c0_20] : memref<8x256xf32, #tpu.memory_space<vmem>>, vector<1x256xf32>
    %35 = vector.broadcast %34 : vector<1x256xf32> to vector<4x256xf32>
    %36 = arith.mulf %33, %35 : vector<4x256xf32>
    %c0_21 = arith.constant 0 : index
    %c0_22 = arith.constant 0 : index
    %37 = vector.load %arg12[%c0_21, %c0_22] : memref<36x256xf32, #tpu.memory_space<vmem>>, vector<4x256xf32>
    tpu.vector_store %arg12[%c0_21, %c0_22], %36 {strides = array<i32>} : memref<36x256xf32, #tpu.memory_space<vmem>>, vector<4x256xf32>,
    %c16_i32 = arith.constant 16 : i32
    %38 = tpu.dynamic_rotate %32 by %c16_i32 dim 1 : vector<4x256xf32>, i32 -> vector<4x256xf32>
    %c1 = arith.constant 1 : index
    %c0_23 = arith.constant 0 : index
    %39 = vector.load %arg10[%c1, %c0_23] : memref<8x256xf32, #tpu.memory_space<vmem>>, vector<1x256xf32>
    %40 = vector.broadcast %39 : vector<1x256xf32> to vector<4x256xf32>
    %41 = arith.mulf %38, %40 : vector<4x256xf32>
    %c4 = arith.constant 4 : index
    %c0_24 = arith.constant 0 : index
    %42 = vector.load %arg12[%c4, %c0_24] : memref<36x256xf32, #tpu.memory_space<vmem>>, vector<4x256xf32>
    tpu.vector_store %arg12[%c4, %c0_24], %41 {strides = array<i32>} : memref<36x256xf32, #tpu.memory_space<vmem>>, vector<4x256xf32>,
    %c15_i32 = arith.constant 15 : i32
    %43 = tpu.dynamic_rotate %32 by %c15_i32 dim 1 : vector<4x256xf32>, i32 -> vector<4x256xf32>
    %c2 = arith.constant 2 : index
    %c0_25 = arith.constant 0 : index
    %44 = vector.load %arg10[%c2, %c0_25] : memref<8x256xf32, #tpu.memory_space<vmem>>, vector<1x256xf32>
    %45 = vector.broadcast %44 : vector<1x256xf32> to vector<4x256xf32>
    %46 = arith.mulf %43, %45 : vector<4x256xf32>
    %c8 = arith.constant 8 : index
    %c0_26 = arith.constant 0 : index
    %47 = vector.load %arg12[%c8, %c0_26] : memref<36x256xf32, #tpu.memory_space<vmem>>, vector<4x256xf32>
    tpu.vector_store %arg12[%c8, %c0_26], %46 {strides = array<i32>} : memref<36x256xf32, #tpu.memory_space<vmem>>, vector<4x256xf32>,
    %c1_i32 = arith.constant 1 : i32
    %48 = tpu.dynamic_rotate %32 by %c1_i32 dim 1 : vector<4x256xf32>, i32 -> vector<4x256xf32>
    %c3 = arith.constant 3 : index
    %c0_27 = arith.constant 0 : index
    %49 = vector.load %arg10[%c3, %c0_27] : memref<8x256xf32, #tpu.memory_space<vmem>>, vector<1x256xf32>
    %50 = vector.broadcast %49 : vector<1x256xf32> to vector<4x256xf32>
    %51 = arith.mulf %48, %50 : vector<4x256xf32>
    %c12 = arith.constant 12 : index
    %c0_28 = arith.constant 0 : index
    %52 = vector.load %arg12[%c12, %c0_28] : memref<36x256xf32, #tpu.memory_space<vmem>>, vector<4x256xf32>
    tpu.vector_store %arg12[%c12, %c0_28], %51 {strides = array<i32>} : memref<36x256xf32, #tpu.memory_space<vmem>>, vector<4x256xf32>,
    %c16 = arith.constant 16 : index
    %c0_29 = arith.constant 0 : index
    %53 = vector.load %arg12[%c16, %c0_29] : memref<36x256xf32, #tpu.memory_space<vmem>>, vector<4x256xf32>
    tpu.vector_store %arg12[%c16, %c0_29], %32 {strides = array<i32>} : memref<36x256xf32, #tpu.memory_space<vmem>>, vector<4x256xf32>,
    %c255_i32 = arith.constant 255 : i32
    %54 = tpu.dynamic_rotate %32 by %c255_i32 dim 1 : vector<4x256xf32>, i32 -> vector<4x256xf32>
    %c4_30 = arith.constant 4 : index
    %c0_31 = arith.constant 0 : index
    %55 = vector.load %arg10[%c4_30, %c0_31] : memref<8x256xf32, #tpu.memory_space<vmem>>, vector<1x256xf32>
    %56 = vector.broadcast %55 : vector<1x256xf32> to vector<4x256xf32>
    %57 = arith.mulf %54, %56 : vector<4x256xf32>
    %c20 = arith.constant 20 : index
    %c0_32 = arith.constant 0 : index
    %58 = vector.load %arg12[%c20, %c0_32] : memref<36x256xf32, #tpu.memory_space<vmem>>, vector<4x256xf32>
    tpu.vector_store %arg12[%c20, %c0_32], %57 {strides = array<i32>} : memref<36x256xf32, #tpu.memory_space<vmem>>, vector<4x256xf32>,
    %c241_i32 = arith.constant 241 : i32
    %59 = tpu.dynamic_rotate %32 by %c241_i32 dim 1 : vector<4x256xf32>, i32 -> vector<4x256xf32>
    %c5 = arith.constant 5 : index
    %c0_33 = arith.constant 0 : index
    %60 = vector.load %arg10[%c5, %c0_33] : memref<8x256xf32, #tpu.memory_space<vmem>>, vector<1x256xf32>
    %61 = vector.broadcast %60 : vector<1x256xf32> to vector<4x256xf32>
    %62 = arith.mulf %59, %61 : vector<4x256xf32>
    %c24 = arith.constant 24 : index
    %c0_34 = arith.constant 0 : index
    %63 = vector.load %arg12[%c24, %c0_34] : memref<36x256xf32, #tpu.memory_space<vmem>>, vector<4x256xf32>
    tpu.vector_store %arg12[%c24, %c0_34], %62 {strides = array<i32>} : memref<36x256xf32, #tpu.memory_space<vmem>>, vector<4x256xf32>,
    %c240_i32 = arith.constant 240 : i32
    %64 = tpu.dynamic_rotate %32 by %c240_i32 dim 1 : vector<4x256xf32>, i32 -> vector<4x256xf32>
    %c6 = arith.constant 6 : index
    %c0_35 = arith.constant 0 : index
    %65 = vector.load %arg10[%c6, %c0_35] : memref<8x256xf32, #tpu.memory_space<vmem>>, vector<1x256xf32>
    %66 = vector.broadcast %65 : vector<1x256xf32> to vector<4x256xf32>
    %67 = arith.mulf %64, %66 : vector<4x256xf32>
    %c28 = arith.constant 28 : index
    %c0_36 = arith.constant 0 : index
    %68 = vector.load %arg12[%c28, %c0_36] : memref<36x256xf32, #tpu.memory_space<vmem>>, vector<4x256xf32>
    tpu.vector_store %arg12[%c28, %c0_36], %67 {strides = array<i32>} : memref<36x256xf32, #tpu.memory_space<vmem>>, vector<4x256xf32>,
    %c239_i32 = arith.constant 239 : i32
    %69 = tpu.dynamic_rotate %32 by %c239_i32 dim 1 : vector<4x256xf32>, i32 -> vector<4x256xf32>
    %c7 = arith.constant 7 : index
    %c0_37 = arith.constant 0 : index
    %70 = vector.load %arg10[%c7, %c0_37] : memref<8x256xf32, #tpu.memory_space<vmem>>, vector<1x256xf32>
    %71 = vector.broadcast %70 : vector<1x256xf32> to vector<4x256xf32>
    %72 = arith.mulf %69, %71 : vector<4x256xf32>
    %c32 = arith.constant 32 : index
    %c0_38 = arith.constant 0 : index
    %73 = vector.load %arg12[%c32, %c0_38] : memref<36x256xf32, #tpu.memory_space<vmem>>, vector<4x256xf32>
    tpu.vector_store %arg12[%c32, %c0_38], %72 {strides = array<i32>} : memref<36x256xf32, #tpu.memory_space<vmem>>, vector<4x256xf32>,
    %c0_39 = arith.constant 0 : index
    %c0_40 = arith.constant 0 : index
    %c0_41 = arith.constant 0 : index
    %74 = vector.load %arg6[%c0_39, %c0_40, %c0_41] : memref<1x4x36xbf16, #tpu.memory_space<vmem>>, vector<1x4x36xbf16>
    %75 = vector.shape_cast %74 : vector<1x4x36xbf16> to vector<4x36xbf16>
    %c0_42 = arith.constant 0 : index
    %c0_43 = arith.constant 0 : index
    %76 = vector.load %arg12[%c0_42, %c0_43] : memref<36x256xf32, #tpu.memory_space<vmem>>, vector<36x256xf32>
    %77 = arith.truncf %76 : vector<36x256xf32> to vector<36x256xbf16>
    %cst_44 = arith.constant dense<0.000000e+00> : vector<4x256xf32>
    %78 = tpu.matmul %75, %77, %cst_44 {dimension_numbers = #tpu.dot_dimension_numbers<[1], [0], [0], [1], [0, 0, 1, 1], [], []>} : vector<4x36xbf16>, vector<36x256xbf16>, vector<4x256xf32> -> vector<4x256xf32>
    %c0_45 = arith.constant 0 : index
    %c0_46 = arith.constant 0 : index
    %c0_47 = arith.constant 0 : index
    %79 = vector.load %arg7[%c0_45, %c0_46, %c0_47] : memref<1x4x1xf32, #tpu.memory_space<vmem>>, vector<1x4x1xf32>
    %80 = vector.shape_cast %79 : vector<1x4x1xf32> to vector<4x1xf32>
    %81 = vector.broadcast %80 : vector<4x1xf32> to vector<4x256xf32>
    %82 = arith.addf %78, %81 : vector<4x256xf32>
    %cst_48 = arith.constant 0.000000e+00 : f32
    %83 = vector.broadcast %cst_48 : f32 to vector<4x256xf32>
    %84 = arith.subf %83, %82 : vector<4x256xf32>
    %85 = math.exp %84 : vector<4x256xf32>
    %cst_49 = arith.constant 1.000000e+00 : f32
    %86 = vector.broadcast %cst_49 : f32 to vector<4x256xf32>
    %87 = arith.addf %86, %85 : vector<4x256xf32>
    %88 = tpu.reciprocal %87 {approx = true} : vector<4x256xf32> -> vector<4x256xf32>
    %89 = arith.mulf %82, %88 : vector<4x256xf32>
    %90 = arith.addf %17, %89 : vector<4x256xf32>
    %91 = arith.truncf %90 : vector<4x256xf32> to vector<4x256xbf16>
    %c0_50 = arith.constant 0 : index
    %c0_51 = arith.constant 0 : index
    %92 = vector.load %arg13[%c0_50, %c0_51] : memref<8x256xbf16, #tpu.memory_space<vmem>>, vector<4x256xbf16>
    tpu.vector_store %arg13[%c0_50, %c0_51], %91 {strides = array<i32>} : memref<8x256xbf16, #tpu.memory_space<vmem>>, vector<4x256xbf16>,
    %c0_52 = arith.constant 0 : index
    %c0_53 = arith.constant 0 : index
    %93 = vector.load %arg8[%c0_52, %c0_53] : memref<8x8xbf16, #tpu.memory_space<vmem>>, vector<8x8xbf16>
    %c0_54 = arith.constant 0 : index
    %c0_55 = arith.constant 0 : index
    %94 = vector.load %arg13[%c0_54, %c0_55] : memref<8x256xbf16, #tpu.memory_space<vmem>>, vector<8x256xbf16>
    %cst_56 = arith.constant dense<0.000000e+00> : vector<8x256xf32>
    %95 = tpu.matmul %93, %94, %cst_56 {dimension_numbers = #tpu.dot_dimension_numbers<[1], [0], [0], [1], [0, 0, 1, 1], [], []>} : vector<8x8xbf16>, vector<8x256xbf16>, vector<8x256xf32> -> vector<8x256xf32>
    %c0_57 = arith.constant 0 : index
    %c0_58 = arith.constant 0 : index
    %96 = vector.load %arg9[%c0_57, %c0_58] : memref<8x1xf32, #tpu.memory_space<vmem>>, vector<8x1xf32>
    %97 = vector.broadcast %96 : vector<8x1xf32> to vector<8x256xf32>
    %98 = arith.addf %95, %97 : vector<8x256xf32>
    %cst_59 = arith.constant 0.000000e+00 : f32
    %99 = vector.broadcast %cst_59 : f32 to vector<8x256xf32>
    %100 = arith.subf %99, %98 : vector<8x256xf32>
    %101 = math.exp %100 : vector<8x256xf32>
    %cst_60 = arith.constant 1.000000e+00 : f32
    %102 = vector.broadcast %cst_60 : f32 to vector<8x256xf32>
    %103 = arith.addf %102, %101 : vector<8x256xf32>
    %104 = tpu.reciprocal %103 {approx = true} : vector<8x256xf32> -> vector<8x256xf32>
    %105 = arith.mulf %98, %104 : vector<8x256xf32>
    %106 = vector.shape_cast %105 : vector<8x256xf32> to vector<1x8x256xf32>
    %c0_61 = arith.constant 0 : index
    %c0_62 = arith.constant 0 : index
    %c0_63 = arith.constant 0 : index
    %107 = vector.load %arg11[%c0_61, %c0_62, %c0_63] : memref<1x8x256xf32, #tpu.memory_space<vmem>>, vector<1x8x256xf32>
    tpu.vector_store %arg11[%c0_61, %c0_62, %c0_63], %106 {strides = array<i32>} : memref<1x8x256xf32, #tpu.memory_space<vmem>>, vector<1x8x256xf32>,
    return
  }
  func.func @transform_0(%arg0: i32) -> (i32, i32, i32) {
    %c0_i32 = arith.constant 0 : i32
    %c0_i32_0 = arith.constant 0 : i32
    %c0_i32_1 = arith.constant 0 : i32
    return %arg0, %c0_i32, %c0_i32_0 : i32, i32, i32
  }
  func.func @transform_1(%arg0: i32) -> (i32, i32) {
    %c0_i32 = arith.constant 0 : i32
    %c0_i32_0 = arith.constant 0 : i32
    %c0_i32_1 = arith.constant 0 : i32
    return %c0_i32, %c0_i32_0 : i32, i32
  }
  func.func @transform_2(%arg0: i32) -> (i32, i32) {
    %c0_i32 = arith.constant 0 : i32
    %c0_i32_0 = arith.constant 0 : i32
    %c0_i32_1 = arith.constant 0 : i32
    return %c0_i32, %c0_i32_0 : i32, i32
  }
  func.func @transform_3(%arg0: i32) -> (i32, i32, i32) {
    %c0_i32 = arith.constant 0 : i32
    %c0_i32_0 = arith.constant 0 : i32
    %c0_i32_1 = arith.constant 0 : i32
    %c0_i32_2 = arith.constant 0 : i32
    return %c0_i32, %c0_i32_0, %c0_i32_1 : i32, i32, i32
  }
  func.func @transform_4(%arg0: i32) -> (i32, i32, i32) {
    %c0_i32 = arith.constant 0 : i32
    %c0_i32_0 = arith.constant 0 : i32
    %c0_i32_1 = arith.constant 0 : i32
    %c0_i32_2 = arith.constant 0 : i32
    return %c0_i32, %c0_i32_0, %c0_i32_1 : i32, i32, i32
  }
  func.func @transform_5(%arg0: i32) -> (i32, i32, i32) {
    %c0_i32 = arith.constant 0 : i32
    %c0_i32_0 = arith.constant 0 : i32
    %c0_i32_1 = arith.constant 0 : i32
    %c0_i32_2 = arith.constant 0 : i32
    return %c0_i32, %c0_i32_0, %c0_i32_1 : i32, i32, i32
  }
  func.func @transform_6(%arg0: i32) -> (i32, i32, i32) {
    %c0_i32 = arith.constant 0 : i32
    %c0_i32_0 = arith.constant 0 : i32
    %c0_i32_1 = arith.constant 0 : i32
    %c0_i32_2 = arith.constant 0 : i32
    return %c0_i32, %c0_i32_0, %c0_i32_1 : i32, i32, i32
  }
  func.func @transform_7(%arg0: i32) -> (i32, i32) {
    %c0_i32 = arith.constant 0 : i32
    %c0_i32_0 = arith.constant 0 : i32
    %c0_i32_1 = arith.constant 0 : i32
    return %c0_i32, %c0_i32_0 : i32, i32
  }
  func.func @transform_8(%arg0: i32) -> (i32, i32) {
    %c0_i32 = arith.constant 0 : i32
    %c0_i32_0 = arith.constant 0 : i32
    %c0_i32_1 = arith.constant 0 : i32
    return %c0_i32, %c0_i32_0 : i32, i32
  }
  func.func @transform_9(%arg0: i32) -> (i32, i32) {
    %c0_i32 = arith.constant 0 : i32
    %c0_i32_0 = arith.constant 0 : i32
    %c0_i32_1 = arith.constant 0 : i32
    return %c0_i32, %c0_i32_0 : i32, i32
  }
  func.func @transform_10(%arg0: i32) -> (i32, i32, i32) {
    %c0_i32 = arith.constant 0 : i32
    %c0_i32_0 = arith.constant 0 : i32
    %c0_i32_1 = arith.constant 0 : i32
    return %arg0, %c0_i32, %c0_i32_0 : i32, i32, i32
  }
}

</mosaic_0001>

<llo_original>
// kernel: c3_forward_pallas.1
$region0: #{c3_forward_pallas.1}
  #allocation0 [shape = 'u32[]', space=smem, size = 0x4, offset = 0x4, fixed_abs, tag = 'smem constant byte address 0x4 - core index']
  #allocation1 [shape = 'u32[144,128]{1,0:T(1,128)}', space=vmem, size = 0x12000, scoped, tag = 'internal scratch']
  #allocation2 [shape = 'f32[36,256]{1,0:T(8,128)}', space=vmem, size = 0xa000, scoped, tag = 'scratch operand']
  #allocation3 [shape = 'bf16[8,256]{1,0:T(8,128)(2,1)}', space=vmem, size = 0x1000, scoped, tag = 'scratch operand']
  %s0 = inlined_call_operand.vmem [shape: f32[2,8,256], index: 0, kind: input, shape index: {}]
  %s1 = inlined_call_operand.vmem [shape: bf16[8,8], index: 1, kind: input, shape index: {}]
  %s2 = inlined_call_operand.vmem [shape: f32[8,1], index: 2, kind: input, shape index: {}]
  %s3 = inlined_call_operand.vmem [shape: bf16[1,4,4], index: 3, kind: input, shape index: {}]
  %s4 = inlined_call_operand.vmem [shape: f32[1,4,1], index: 4, kind: input, shape index: {}]
  %s5 = inlined_call_operand.vmem [shape: bf16[1,4,36], index: 5, kind: input, shape index: {}]
  %s6 = inlined_call_operand.vmem [shape: f32[1,4,1], index: 6, kind: input, shape index: {}]
  %s7 = inlined_call_operand.vmem [shape: bf16[8,8], index: 7, kind: input, shape index: {}]
  %s8 = inlined_call_operand.vmem [shape: f32[8,1], index: 8, kind: input, shape index: {}]
  %s9 = inlined_call_operand.vmem [shape: f32[8,256], index: 9, kind: input, shape index: {}]
  %s10 = inlined_call_operand.vmem [shape: f32[2,8,256], index: 10, kind: output, shape index: {}]
  %s11 = sld [smem:[#allocation0]]
  $region73: #{c3_forward_pallas.1} parent=0
    _
  %s13 = ssub.s32 1, %s11
  %s14 = scalar_select 0, %s13, %s11
  loop: start=0, step=1, limit=4
  $region2: #{c3_forward_pallas.1} parent=0 // loop_pre_header
    _
  $region3: #{c3_forward_pallas.1} parent=0 // loop_header
    %s16 = sphi 0, %s20
    %p17 = scmp.ge.s32.totalorder %s16, 4
    %s26 = sphi 0, %s28
    %s29 = sphi 0, %s26
    %s30 = sphi 0, %s29
    %s46 = sphi 0, %s30
    %s50 = sphi 0, %s50
    %s52 = sphi 0, %s50
    %s53 = sphi 0, %s52
    %s67 = sphi 0, %s53
    %s71 = sphi 0, %s71
    %s73 = sphi 0, %s71
    %s74 = sphi 0, %s73
    %s88 = sphi 0, %s74
    %s92 = sphi 0, %s92
    %s94 = sphi 0, %s92
    %s95 = sphi 0, %s94
    %s109 = sphi 0, %s95
    %s113 = sphi 0, %s113
    %s115 = sphi 0, %s113
    %s116 = sphi 0, %s115
    %s130 = sphi 0, %s116
    %s134 = sphi 0, %s134
    %s136 = sphi 0, %s134
    %s137 = sphi 0, %s136
    %s151 = sphi 0, %s137
    %s155 = sphi 0, %s155
    %s157 = sphi 0, %s155
    %s158 = sphi 0, %s157
    %s172 = sphi 0, %s158
    %s176 = sphi 0, %s176
    %s178 = sphi 0, %s176
    %s179 = sphi 0, %s178
    %s193 = sphi 0, %s179
    %s197 = sphi 0, %s197
    %s199 = sphi 0, %s197
    %s200 = sphi 0, %s199
    %s214 = sphi 0, %s200
    %s218 = sphi 0, %s218
    %s220 = sphi 0, %s218
    %s221 = sphi 0, %s220
    %s235 = sphi 0, %s221
    %s241 = sphi 0, %s243
    %s244 = sphi 0, %s241
    %s245 = sphi 0, %s244
    %s261 = sphi 0, %s245
  $region4: #{c3_forward_pallas.1} parent=0 // loop_header_branch
    %19 = sbr.rel (%p17) target = $region8
  $region5: #{c3_forward_pallas.1} parent=0 // loop_body
    %s21 = ssub.s32 %s16, 1
    %s22 = ssub.s32 %s16, 2
    %s23 = sadd.s32 %s16, 1
    %s24 = ssub.s32 %s16, %s23
    %p25 = scmp.eq.s32.totalorder %s24, 0
    %s27 = sadd.s32 %s26, 1
    %s28 = scalar_select %p25, %s26, %s27
    %p31 = pneg %p25
    %p32 = scmp.eq.s32.totalorder %s16, 1
    %p33 = por %p31, %p32
    %p34 = scmp.ne.s32.totalorder %s26, %s29
    %p35 = scmp.eq.s32.totalorder %s16, 0
    %p36 = por %p34, %p35
    %p37 = scmp.ne.s32.totalorder %s26, %s29
    %p38 = scmp.eq.s32.totalorder %s21, 1
    %p39 = por %p37, %p38
    %p40 = scmp.ne.s32.totalorder %s29, %s30
    %p41 = scmp.eq.s32.totalorder %s21, 0
    %p42 = por %p40, %p41
    %p43 = scmp.ne.s32.totalorder %s29, %s30
    %p44 = scmp.eq.s32.totalorder %s22, 1
    %p45 = por %p43, %p44
    %p47 = scmp.ne.s32.totalorder %s30, %s46
    %p48 = scmp.eq.s32.totalorder %s22, 0
    %p49 = por %p47, %p48
    %s51 = sadd.s32 %s50, 1
    %p54 = scmp.eq.s32.totalorder %s16, 1
    %p55 = scmp.ne.s32.totalorder %s50, %s52
    %p56 = scmp.eq.s32.totalorder %s16, 0
    %p57 = por %p55, %p56
    %p58 = scmp.ne.s32.totalorder %s50, %s52
    %p59 = scmp.eq.s32.totalorder %s21, 1
    %p60 = por %p58, %p59
    %p61 = scmp.ne.s32.totalorder %s52, %s53
    %p62 = scmp.eq.s32.totalorder %s21, 0
    %p63 = por %p61, %p62
    %p64 = scmp.ne.s32.totalorder %s52, %s53
    %p65 = scmp.eq.s32.totalorder %s22, 1
    %p66 = por %p64, %p65
    %p68 = scmp.ne.s32.totalorder %s53, %s67
    %p69 = scmp.eq.s32.totalorder %s22, 0
    %p70 = por %p68, %p69
    %s72 = sadd.s32 %s71, 1
    %p75 = scmp.eq.s32.totalorder %s16, 1
    %p76 = scmp.ne.s32.totalorder %s71, %s73
    %p77 = scmp.eq.s32.totalorder %s16, 0
    %p78 = por %p76, %p77
    %p79 = scmp.ne.s32.totalorder %s71, %s73
    %p80 = scmp.eq.s32.totalorder %s21, 1
    %p81 = por %p79, %p80
    %p82 = scmp.ne.s32.totalorder %s73, %s74
    %p83 = scmp.eq.s32.totalorder %s21, 0
    %p84 = por %p82, %p83
    %p85 = scmp.ne.s32.totalorder %s73, %s74
    %p86 = scmp.eq.s32.totalorder %s22, 1
    %p87 = por %p85, %p86
    %p89 = scmp.ne.s32.totalorder %s74, %s88
    %p90 = scmp.eq.s32.totalorder %s22, 0
    %p91 = por %p89, %p90
    %s93 = sadd.s32 %s92, 1
    %p96 = scmp.eq.s32.totalorder %s16, 1
    %p97 = scmp.ne.s32.totalorder %s92, %s94
    %p98 = scmp.eq.s32.totalorder %s16, 0
    %p99 = por %p97, %p98
    %p100 = scmp.ne.s32.totalorder %s92, %s94
    %p101 = scmp.eq.s32.totalorder %s21, 1
    %p102 = por %p100, %p101
    %p103 = scmp.ne.s32.totalorder %s94, %s95
    %p104 = scmp.eq.s32.totalorder %s21, 0
    %p105 = por %p103, %p104
    %p106 = scmp.ne.s32.totalorder %s94, %s95
    %p107 = scmp.eq.s32.totalorder %s22, 1
    %p108 = por %p106, %p107
    %p110 = scmp.ne.s32.totalorder %s95, %s109
    %p111 = scmp.eq.s32.totalorder %s22, 0
    %p112 = por %p110, %p111
    %s114 = sadd.s32 %s113, 1
    %p117 = scmp.eq.s32.totalorder %s16, 1
    %p118 = scmp.ne.s32.totalorder %s113, %s115
    %p119 = scmp.eq.s32.totalorder %s16, 0
    %p120 = por %p118, %p119
    %p121 = scmp.ne.s32.totalorder %s113, %s115
    %p122 = scmp.eq.s32.totalorder %s21, 1
    %p123 = por %p121, %p122
    %p124 = scmp.ne.s32.totalorder %s115, %s116
    %p125 = scmp.eq.s32.totalorder %s21, 0
    %p126 = por %p124, %p125
    %p127 = scmp.ne.s32.totalorder %s115, %s116
    %p128 = scmp.eq.s32.totalorder %s22, 1
    %p129 = por %p127, %p128
    %p131 = scmp.ne.s32.totalorder %s116, %s130
    %p132 = scmp.eq.s32.totalorder %s22, 0
    %p133 = por %p131, %p132
    %s135 = sadd.s32 %s134, 1
    %p138 = scmp.eq.s32.totalorder %s16, 1
    %p139 = scmp.ne.s32.totalorder %s134, %s136
    %p140 = scmp.eq.s32.totalorder %s16, 0
    %p141 = por %p139, %p140
    %p142 = scmp.ne.s32.totalorder %s134, %s136
    %p143 = scmp.eq.s32.totalorder %s21, 1
    %p144 = por %p142, %p143
    %p145 = scmp.ne.s32.totalorder %s136, %s137
    %p146 = scmp.eq.s32.totalorder %s21, 0
    %p147 = por %p145, %p146
    %p148 = scmp.ne.s32.totalorder %s136, %s137
    %p149 = scmp.eq.s32.totalorder %s22, 1
    %p150 = por %p148, %p149
    %p152 = scmp.ne.s32.totalorder %s137, %s151
    %p153 = scmp.eq.s32.totalorder %s22, 0
    %p154 = por %p152, %p153
    %s156 = sadd.s32 %s155, 1
    %p159 = scmp.eq.s32.totalorder %s16, 1
    %p160 = scmp.ne.s32.totalorder %s155, %s157
    %p161 = scmp.eq.s32.totalorder %s16, 0
    %p162 = por %p160, %p161
    %p163 = scmp.ne.s32.totalorder %s155, %s157
    %p164 = scmp.eq.s32.totalorder %s21, 1
    %p165 = por %p163, %p164
    %p166 = scmp.ne.s32.totalorder %s157, %s158
    %p167 = scmp.eq.s32.totalorder %s21, 0
    %p168 = por %p166, %p167
    %p169 = scmp.ne.s32.totalorder %s157, %s158
    %p170 = scmp.eq.s32.totalorder %s22, 1
    %p171 = por %p169, %p170
    %p173 = scmp.ne.s32.totalorder %s158, %s172
    %p174 = scmp.eq.s32.totalorder %s22, 0
    %p175 = por %p173, %p174
    %s177 = sadd.s32 %s176, 1
    %p180 = scmp.eq.s32.totalorder %s16, 1
    %p181 = scmp.ne.s32.totalorder %s176, %s178
    %p182 = scmp.eq.s32.totalorder %s16, 0
    %p183 = por %p181, %p182
    %p184 = scmp.ne.s32.totalorder %s176, %s178
    %p185 = scmp.eq.s32.totalorder %s21, 1
    %p186 = por %p184, %p185
    %p187 = scmp.ne.s32.totalorder %s178, %s179
    %p188 = scmp.eq.s32.totalorder %s21, 0
    %p189 = por %p187, %p188
    %p190 = scmp.ne.s32.totalorder %s178, %s179
    %p191 = scmp.eq.s32.totalorder %s22, 1
    %p192 = por %p190, %p191
    %p194 = scmp.ne.s32.totalorder %s179, %s193
    %p195 = scmp.eq.s32.totalorder %s22, 0
    %p196 = por %p194, %p195
    %s198 = sadd.s32 %s197, 1
    %p201 = scmp.eq.s32.totalorder %s16, 1
    %p202 = scmp.ne.s32.totalorder %s197, %s199
    %p203 = scmp.eq.s32.totalorder %s16, 0
    %p204 = por %p202, %p203
    %p205 = scmp.ne.s32.totalorder %s197, %s199
    %p206 = scmp.eq.s32.totalorder %s21, 1
    %p207 = por %p205, %p206
    %p208 = scmp.ne.s32.totalorder %s199, %s200
    %p209 = scmp.eq.s32.totalorder %s21, 0
    %p210 = por %p208, %p209
    %p211 = scmp.ne.s32.totalorder %s199, %s200
    %p212 = scmp.eq.s32.totalorder %s22, 1
    %p213 = por %p211, %p212
    %p215 = scmp.ne.s32.totalorder %s200, %s214
    %p216 = scmp.eq.s32.totalorder %s22, 0
    %p217 = por %p215, %p216
    %s219 = sadd.s32 %s218, 1
    %p222 = scmp.eq.s32.totalorder %s16, 1
    %p223 = scmp.ne.s32.totalorder %s218, %s220
    %p224 = scmp.eq.s32.totalorder %s16, 0
    %p225 = por %p223, %p224
    %p226 = scmp.ne.s32.totalorder %s218, %s220
    %p227 = scmp.eq.s32.totalorder %s21, 1
    %p228 = por %p226, %p227
    %p229 = scmp.ne.s32.totalorder %s220, %s221
    %p230 = scmp.eq.s32.totalorder %s21, 0
    %p231 = por %p229, %p230
    %p232 = scmp.ne.s32.totalorder %s220, %s221
    %p233 = scmp.eq.s32.totalorder %s22, 1
    %p234 = por %p232, %p233
    %p236 = scmp.ne.s32.totalorder %s221, %s235
    %p237 = scmp.eq.s32.totalorder %s22, 0
    %p238 = por %p236, %p237
    %s239 = ssub.s32 %s16, %s23
    %p240 = scmp.eq.s32.totalorder %s239, 0
    %s242 = sadd.s32 %s241, 1
    %s243 = scalar_select %p240, %s241, %s242
    %p246 = pneg %p240
    %p247 = scmp.eq.s32.totalorder %s16, 1
    %p248 = por %p246, %p247
    %p249 = scmp.ne.s32.totalorder %s241, %s244
    %p250 = scmp.eq.s32.totalorder %s16, 0
    %p251 = por %p249, %p250
    %p252 = scmp.ne.s32.totalorder %s241, %s244
    %p253 = scmp.eq.s32.totalorder %s21, 1
    %p254 = por %p252, %p253
    %p255 = scmp.ne.s32.totalorder %s244, %s245
    %p256 = scmp.eq.s32.totalorder %s21, 0
    %p257 = por %p255, %p256
    %p258 = scmp.ne.s32.totalorder %s244, %s245
    %p259 = scmp.eq.s32.totalorder %s22, 1
    %p260 = por %p258, %p259
    %p262 = scmp.ne.s32.totalorder %s245, %s261
    %p263 = scmp.eq.s32.totalorder %s22, 0
    %p264 = por %p262, %p263
    %p265 = scmp.le.s32.totalorder 1, %s16
    %p266 = scmp.lt.s32.totalorder %s16, 3
    %p267 = pnand %p265, %p266
    %p268 = pneg %p267
    // Predicated region
    $region9: #{c3_forward_pallas.1} parent=5 // pred_check
      _
    $region10: #{c3_forward_pallas.1} parent=5 // pred_check_branch
      %270 = sbr.rel (%p267) target = $region12
    $region11: #{c3_forward_pallas.1} parent=5 // pred_region
      %s271 = ssub.s32 %s16, 1
      // Predicated region
      $region13: #{c3_forward_pallas.1} parent=11 // pred_check
        %p272 = pneg %p63
      $region14: #{c3_forward_pallas.1} parent=11 // pred_check_branch
        %274 = sbr.rel (%p272) target = $region16
      $region15: #{c3_forward_pallas.1} parent=11 // pred_region
        _
      $region16: #{c3_forward_pallas.1} parent=11 // pred_fallthru
        _
      // Predicated region
      $region17: #{c3_forward_pallas.1} parent=11 // pred_check
        %p275 = pneg %p84
      $region18: #{c3_forward_pallas.1} parent=11 // pred_check_branch
        %277 = sbr.rel (%p275) target = $region20
      $region19: #{c3_forward_pallas.1} parent=11 // pred_region
        _
      $region20: #{c3_forward_pallas.1} parent=11 // pred_fallthru
        _
      // Predicated region
      $region21: #{c3_forward_pallas.1} parent=11 // pred_check
        %p278 = pneg %p105
      $region22: #{c3_forward_pallas.1} parent=11 // pred_check_branch
        %280 = sbr.rel (%p278) target = $region24
      $region23: #{c3_forward_pallas.1} parent=11 // pred_region
        _
      $region24: #{c3_forward_pallas.1} parent=11 // pred_fallthru
        _
      // Predicated region
      $region25: #{c3_forward_pallas.1} parent=11 // pred_check
        %p281 = pneg %p126
      $region26: #{c3_forward_pallas.1} parent=11 // pred_check_branch
        %283 = sbr.rel (%p281) target = $region28
      $region27: #{c3_forward_pallas.1} parent=11 // pred_region
        _
      $region28: #{c3_forward_pallas.1} parent=11 // pred_fallthru
        _
      // Predicated region
      $region29: #{c3_forward_pallas.1} parent=11 // pred_check
        %p284 = pneg %p147
      $region30: #{c3_forward_pallas.1} parent=11 // pred_check_branch
        %286 = sbr.rel (%p284) target = $region32
      $region31: #{c3_forward_pallas.1} parent=11 // pred_region
        _
      $region32: #{c3_forward_pallas.1} parent=11 // pred_fallthru
        _
      // Predicated region
      $region33: #{c3_forward_pallas.1} parent=11 // pred_check
        %p287 = pneg %p168
      $region34: #{c3_forward_pallas.1} parent=11 // pred_check_branch
        %289 = sbr.rel (%p287) target = $region36
      $region35: #{c3_forward_pallas.1} parent=11 // pred_region
        _
      $region36: #{c3_forward_pallas.1} parent=11 // pred_fallthru
        _
      // Predicated region
      $region37: #{c3_forward_pallas.1} parent=11 // pred_check
        %p290 = pneg %p189
      $region38: #{c3_forward_pallas.1} parent=11 // pred_check_branch
        %292 = sbr.rel (%p290) target = $region40
      $region39: #{c3_forward_pallas.1} parent=11 // pred_region
        _
      $region40: #{c3_forward_pallas.1} parent=11 // pred_fallthru
        _
      // Predicated region
      $region41: #{c3_forward_pallas.1} parent=11 // pred_check
        %p293 = pneg %p210
      $region42: #{c3_forward_pallas.1} parent=11 // pred_check_branch
        %295 = sbr.rel (%p293) target = $region44
      $region43: #{c3_forward_pallas.1} parent=11 // pred_region
        _
      $region44: #{c3_forward_pallas.1} parent=11 // pred_fallthru
        _
      // Predicated region
      $region45: #{c3_forward_pallas.1} parent=11 // pred_check
        %p296 = pneg %p231
      $region46: #{c3_forward_pallas.1} parent=11 // pred_check_branch
        %298 = sbr.rel (%p296) target = $region48
      $region47: #{c3_forward_pallas.1} parent=11 // pred_region
        _
      $region48: #{c3_forward_pallas.1} parent=11 // pred_fallthru
        _
    $region12: #{c3_forward_pallas.1} parent=5 // pred_fallthru
      _
    %p299 = scmp.lt.s32.totalorder %s16, 2
    // Predicated region
    $region49: #{c3_forward_pallas.1} parent=5 // pred_check
      %p300 = pneg %p299
    $region50: #{c3_forward_pallas.1} parent=5 // pred_check_branch
      %302 = sbr.rel (%p300) target = $region52
    $region51: #{c3_forward_pallas.1} parent=5 // pred_region
      // Predicated region
      $region53: #{c3_forward_pallas.1} parent=51 // pred_check
        %p303 = pneg %p36
      $region54: #{c3_forward_pallas.1} parent=51 // pred_check_branch
        %305 = sbr.rel (%p303) target = $region56
      $region55: #{c3_forward_pallas.1} parent=51 // pred_region
        %p306 = scmp.lt.s32.totalorder %s16, 1
        %s307 = scalar_select %p306, %s16, 1
        %s308 = smul.addr %s307, 2
        %s309 = smul.addr %s308, 8
        %s310 = scalar_lea.vmem %s0, %s309
      $region56: #{c3_forward_pallas.1} parent=51 // pred_fallthru
        _
    $region52: #{c3_forward_pallas.1} parent=5 // pred_fallthru
      _
    %p311 = scmp.le.s32.totalorder 1, %s16
    %p312 = scmp.lt.s32.totalorder %s16, 3
    %p313 = pnand %p311, %p312
    %p314 = pneg %p313
    // Predicated region
    $region57: #{c3_forward_pallas.1} parent=5 // pred_check
      _
    $region58: #{c3_forward_pallas.1} parent=5 // pred_check_branch
      %316 = sbr.rel (%p313) target = $region60
    $region59: #{c3_forward_pallas.1} parent=5 // pred_region
      %s317 = ssub.s32 %s16, 1
      %p318 = scmp.lt.s32.totalorder %s21, 1
      %s319 = scalar_select %p318, %s21, 1
      %s320 = smul.addr %s319, 2
      %s321 = smul.addr %s320, 8
      %s322 = scalar_lea.vmem %s0, %s321
      %p323 = pneg %p42
      %p324 = pneg %p39
      %p325 = pneg %p63
      %p326 = pneg %p60
      %p327 = pneg %p84
      %p328 = pneg %p81
      %p329 = pneg %p105
      %p330 = pneg %p102
      %p331 = pneg %p126
      %p332 = pneg %p123
      %p333 = pneg %p147
      %p334 = pneg %p144
      %p335 = pneg %p168
      %p336 = pneg %p165
      %p337 = pneg %p189
      %p338 = pneg %p186
      %p339 = pneg %p210
      %p340 = pneg %p207
      %p341 = pneg %p231
      %p342 = pneg %p228
      %p343 = pneg %p257
      %p344 = pneg %p254
      %p345 = scmp.lt.s32.totalorder %s21, 1
      %s346 = scalar_select %p345, %s21, 1
      %s347 = smul.addr %s346, 2
      %s348 = smul.addr %s347, 8
      %s349 = scalar_lea.vmem %s10, %s348
      %p350 = scmp.lt.s32.totalorder %s21, 1
      %s351 = scalar_select %p350, %s21, 1
      %s352 = smul.addr %s351, 2
      %s353 = smul.addr %s352, 8
      %s354 = scalar_lea.vmem %s0, %s353
      %p355 = scmp.lt.s32.totalorder %s21, 1
      %s356 = scalar_select %p355, %s21, 1
      %s357 = smul.addr %s356, 2
      %s358 = smul.addr %s357, 8
      %s359 = scalar_lea.vmem %s10, %s358
      %v361 = vld [vmem:[%s354] sm:$0xff]
      %v362 = vld [vmem:[%s354 + $0x8] sm:$0xff]
      %v363 = vpack.c.bf16 %v361, %v361
      %v364 = vpack.c.bf16 %v362, %v362
      %v365 = vld [vmem:[%s1] sm:$0xf]
      %v366 = vld [vmem:[%s2] sm:$0xff]
      %368 = vset.pattern.permute.xlu0 0
      %369 = vperm.xlu0 %368, %v366
      %v370 = vpop.permute.xlu0 %369
      %vm372 = vcmask 64512
      %v374 = vsel %vm372, %v365, 0
      %vm376 = vcmask 1043456
      %v378 = vsel %vm376, %v363, 0
      %v381 = vsel %vm376, %v364, 0
      %383 = vmatprep.subr.bf16.mxu0 %v381
      %384 = vmatpush1.bf16.msra.mxu0 %v378
      %385 = vmatprep.subr.bf16.mxu0 0
      %386 = vmatpush1.bf16.msra.mxu0 0
      %387 = vmatprep.subr.bf16.mxu0 0
      %388 = vmatpush1.bf16.msra.mxu0 0
      %389 = vmatprep.subr.bf16.mxu0 0
      %390 = vmatpush1.bf16.msra.mxu0 0
      %391 = vmatprep.subr.bf16.mxu0 0
      %392 = vmatpush1.bf16.msra.mxu0 0
      %393 = vmatprep.subr.bf16.mxu0 0
      %394 = vmatpush1.bf16.msra.mxu0 0
      %395 = vmatprep.subr.bf16.mxu0 0
      %396 = vmatpush1.bf16.msra.mxu0 0
      %397 = vmatprep.subr.bf16.mxu0 0
      %398 = vmatpush1.bf16.msra.mxu0 0
      %399 = vmatprep.subr.bf16.mxu0 0
      %400 = vmatpush1.bf16.msra.mxu0 0
      %401 = vmatprep.subr.bf16.mxu0 0
      %402 = vmatpush1.bf16.msra.mxu0 0
      %403 = vmatprep.subr.bf16.mxu0 0
      %404 = vmatpush1.bf16.msra.mxu0 0
      %405 = vmatprep.subr.bf16.mxu0 0
      %406 = vmatpush1.bf16.msra.mxu0 0
      %407 = vmatprep.subr.bf16.mxu0 0
      %408 = vmatpush1.bf16.msra.mxu0 0
      %409 = vmatprep.subr.bf16.mxu0 0
      %410 = vmatpush1.bf16.msra.mxu0 0
      %411 = vmatprep.subr.bf16.mxu0 0
      %412 = vmatpush1.bf16.msra.mxu0 0
      %413 = vmatprep.subr.bf16.mxu0 0
      %414 = vmatpush1.bf16.msra.mxu0 0
      %415 = vmatprep.mubr.bf16.mxu0 0
      %416 = vmatmul.mubr.bf16.gmra.mrb[0].mxu0 %v374
      %v417 = vpop.f32.mrb[0].mxu0
      %v418 = vadd.f32 %v370, %v417
      %v419 = vpop.f32.mrb[0].mxu0
      %v420 = vadd.f32 %v370, %v419
      %v421 = vpop.f32.mrb[0].mxu0
      %v422 = vpop.f32.mrb[0].mxu0
      %423 = vdwg.mxu0
      %v424 = vsub.f32 0.0, %v418
      %v425 = vsub.f32 0.0, %v420
      %v426 = vmul.f32 %v424, 1.442695
      %v427 = vpow.pop %v426
      %v428 = vmul.f32 %v425, 1.442695
      %v429 = vpow.pop %v428
      %v430 = vadd.f32 %v427, 1.0
      %v431 = vadd.f32 %v429, 1.0
      %v432 = vrcp.pop %v430
      %v433 = vrcp.pop %v431
      %v434 = vmul.f32 %v418, %v432
      %v435 = vmul.f32 %v420, %v433
      %v436 = vpack.c.bf16 %v434, %v434
      %v437 = vpack.c.bf16 %v435, %v435
      %v440 = vunpack.c.l.b16 %v436
      %v441 = vunpack.c.l.b16 %v437
      %v442 = vpack.c.b16 %v441, %v440
      %444 = vst [vmem:[#allocation3] sm:$0xff] %v442
      %v445 = vld [vmem:[%s3] sm:$0x3]
      %v446 = vld [vmem:[%s4] sm:$0xf]
      %448 = vset.pattern.permute.xlu0 0
      %449 = vperm.xlu0 %448, %v446
      %v450 = vpop.permute.xlu0 %449
      %vm452 = vcmask 31744
      %v454 = vsel %vm452, %v445, 0
      %vm456 = vcmask 1041408
      %v458 = vsel %vm456, %v436, 0
      %v461 = vsel %vm456, %v437, 0
      %463 = vmatprep.subr.bf16.mxu0 %v461
      %464 = vmatpush1.bf16.msra.mxu0 %v458
      %465 = vmatprep.subr.bf16.mxu0 0
      %466 = vmatpush1.bf16.msra.mxu0 0
      %467 = vmatprep.subr.bf16.mxu0 0
      %468 = vmatpush1.bf16.msra.mxu0 0
      %469 = vmatprep.subr.bf16.mxu0 0
      %470 = vmatpush1.bf16.msra.mxu0 0
      %471 = vmatprep.subr.bf16.mxu0 0
      %472 = vmatpush1.bf16.msra.mxu0 0
      %473 = vmatprep.subr.bf16.mxu0 0
      %474 = vmatpush1.bf16.msra.mxu0 0
      %475 = vmatprep.subr.bf16.mxu0 0
      %476 = vmatpush1.bf16.msra.mxu0 0
      %477 = vmatprep.subr.bf16.mxu0 0
      %478 = vmatpush1.bf16.msra.mxu0 0
      %479 = vmatprep.subr.bf16.mxu0 0
      %480 = vmatpush1.bf16.msra.mxu0 0
      %481 = vmatprep.subr.bf16.mxu0 0
      %482 = vmatpush1.bf16.msra.mxu0 0
      %483 = vmatprep.subr.bf16.mxu0 0
      %484 = vmatpush1.bf16.msra.mxu0 0
      %485 = vmatprep.subr.bf16.mxu0 0
      %486 = vmatpush1.bf16.msra.mxu0 0
      %487 = vmatprep.subr.bf16.mxu0 0
      %488 = vmatpush1.bf16.msra.mxu0 0
      %489 = vmatprep.subr.bf16.mxu0 0
      %490 = vmatpush1.bf16.msra.mxu0 0
      %491 = vmatprep.subr.bf16.mxu0 0
      %492 = vmatpush1.bf16.msra.mxu0 0
      %493 = vmatprep.subr.bf16.mxu0 0
      %494 = vmatpush1.bf16.msra.mxu0 0
      %495 = vmatprep.mubr.bf16.mxu0 0
      %496 = vmatmul.mubr.bf16.gmra.mrb[0].mxu0 %v454
      %v497 = vpop.f32.mrb[0].mxu0
      %v498 = vadd.f32 %v450, %v497
      %v499 = vpop.f32.mrb[0].mxu0
      %v500 = vadd.f32 %v450, %v499
      %v501 = vpop.f32.mrb[0].mxu0
      %v502 = vpop.f32.mrb[0].mxu0
      %503 = vdwg.mxu0
      %v504 = vsub.f32 0.0, %v498
      %v505 = vsub.f32 0.0, %v500
      %v506 = vmul.f32 %v504, 1.442695
      %v507 = vpow.pop %v506
      %v508 = vmul.f32 %v505, 1.442695
      %v509 = vpow.pop %v508
      %v510 = vadd.f32 %v507, 1.0
      %v511 = vadd.f32 %v509, 1.0
      %v512 = vrcp.pop %v510
      %v513 = vrcp.pop %v511
      %v514 = vmul.f32 %v498, %v512
      %v515 = vmul.f32 %v500, %v513
      %516 = vrot.lane.b32.xlu0 %v514, 17
      %v517 = vpop.permute.xlu0 %516
      %518 = vrot.lane.b32.xlu0 %v515, 17
      %v519 = vpop.permute.xlu0 %518
      %v520 = vlaneseq
      %v521 = vand.u32 %v520, 127
      %vm522 = vcmp.lt.s32.totalorder %v521, 17
      %v523 = vsel %vm522, %v517, %v519
      %v524 = vsel %vm522, %v519, %v517
      %v525 = vld [vmem:[%s9] ss:$8 sm:$0x3]
      %v527 = vlaneseq
      %v528 = vshrl.u32 %v527, 7
      %v529 = vsub.s32 0, %v528
      %v530 = vrot.slane %v525, %v529
      %v531 = vlaneseq
      %v532 = vshrl.u32 %v531, 7
      %v533 = vsub.s32 1, %v532
      %v534 = vrot.slane %v525, %v533
      %v537 = vmul.f32 %v524, %v530
      %v538 = vmul.f32 %v523, %v534
      %539 = vst [vmem:[#allocation2] sm:$0xf] %v537
      %540 = vst [vmem:[#allocation2 + $0x8] sm:$0xf] %v538
      %541 = vrot.lane.b32.xlu0 %v514, 16
      %v542 = vpop.permute.xlu0 %541
      %543 = vrot.lane.b32.xlu0 %v515, 16
      %v544 = vpop.permute.xlu0 %543
      %vm545 = vcmp.lt.s32.totalorder %v521, 16
      %v546 = vsel %vm545, %v542, %v544
      %v547 = vsel %vm545, %v544, %v542
      %s548 = scalar_lea.vmem %s9, 1
      %v549 = vld [vmem:[%s548] ss:$8 sm:$0x3]
      %v551 = vlaneseq
      %v552 = vshrl.u32 %v551, 7
      %v553 = vsub.s32 0, %v552
      %v554 = vrot.slane %v549, %v553
      %v555 = vlaneseq
      %v556 = vshrl.u32 %v555, 7
      %v557 = vsub.s32 1, %v556
      %v558 = vrot.slane %v549, %v557
      %v561 = vmul.f32 %v547, %v554
      %v562 = vmul.f32 %v546, %v558
      %v565 = vrot.slane %v561, 4
      %v566 = vrot.slane %v562, 4
      %569 = vst [vmem:[#allocation2] sm:$0xf0] %v565
      %570 = vst [vmem:[#allocation2 + $0x8] sm:$0xf0] %v566
      %571 = vrot.lane.b32.xlu0 %v514, 15
      %v572 = vpop.permute.xlu0 %571
      %573 = vrot.lane.b32.xlu0 %v515, 15
      %v574 = vpop.permute.xlu0 %573
      %vm575 = vcmp.lt.s32.totalorder %v521, 15
      %v576 = vsel %vm575, %v572, %v574
      %v577 = vsel %vm575, %v574, %v572
      %s578 = scalar_lea.vmem %s9, 2
      %v579 = vld [vmem:[%s578] ss:$8 sm:$0x3]
      %v581 = vlaneseq
      %v582 = vshrl.u32 %v581, 7
      %v583 = vsub.s32 0, %v582
      %v584 = vrot.slane %v579, %v583
      %v585 = vlaneseq
      %v586 = vshrl.u32 %v585, 7
      %v587 = vsub.s32 1, %v586
      %v588 = vrot.slane %v579, %v587
      %v591 = vmul.f32 %v577, %v584
      %v592 = vmul.f32 %v576, %v588
      %593 = vst [vmem:[#allocation2 + $0x10] sm:$0xf] %v591
      %594 = vst [vmem:[#allocation2 + $0x18] sm:$0xf] %v592
      %595 = vrot.lane.b32.xlu0 %v514, 1
      %v596 = vpop.permute.xlu0 %595
      %597 = vrot.lane.b32.xlu0 %v515, 1
      %v598 = vpop.permute.xlu0 %597
      %vm599 = vcmp.lt.s32.totalorder %v521, 1
      %v600 = vsel %vm599, %v596, %v598
      %v601 = vsel %vm599, %v598, %v596
      %s602 = scalar_lea.vmem %s9, 3
      %v603 = vld [vmem:[%s602] ss:$8 sm:$0x3]
      %v605 = vlaneseq
      %v606 = vshrl.u32 %v605, 7
      %v607 = vsub.s32 0, %v606
      %v608 = vrot.slane %v603, %v607
      %v609 = vlaneseq
      %v610 = vshrl.u32 %v609, 7
      %v611 = vsub.s32 1, %v610
      %v612 = vrot.slane %v603, %v611
      %v615 = vmul.f32 %v601, %v608
      %v616 = vmul.f32 %v600, %v612
      %v619 = vrot.slane %v615, 4
      %v620 = vrot.slane %v616, 4
      %623 = vst [vmem:[#allocation2 + $0x10] sm:$0xf0] %v619
      %624 = vst [vmem:[#allocation2 + $0x18] sm:$0xf0] %v620
      %625 = vst [vmem:[#allocation2 + $0x20] sm:$0xf] %v514
      %626 = vst [vmem:[#allocation2 + $0x28] sm:$0xf] %v515
      %627 = vrot.lane.b32.xlu0 %v514, 127
      %v628 = vpop.permute.xlu0 %627
      %629 = vrot.lane.b32.xlu0 %v515, 127
      %v630 = vpop.permute.xlu0 %629
      %vm631 = vcmp.lt.s32.totalorder %v521, 127
      %v632 = vsel %vm631, %v628, %v630
      %v633 = vsel %vm631, %v630, %v628
      %s634 = scalar_lea.vmem %s9, 4
      %v635 = vld [vmem:[%s634] ss:$8 sm:$0x3]
      %v637 = vlaneseq
      %v638 = vshrl.u32 %v637, 7
      %v639 = vsub.s32 0, %v638
      %v640 = vrot.slane %v635, %v639
      %v641 = vlaneseq
      %v642 = vshrl.u32 %v641, 7
      %v643 = vsub.s32 1, %v642
      %v644 = vrot.slane %v635, %v643
      %v647 = vmul.f32 %v632, %v640
      %v648 = vmul.f32 %v633, %v644
      %v651 = vrot.slane %v647, 4
      %v652 = vrot.slane %v648, 4
      %655 = vst [vmem:[#allocation2 + $0x20] sm:$0xf0] %v651
      %656 = vst [vmem:[#allocation2 + $0x28] sm:$0xf0] %v652
      %657 = vrot.lane.b32.xlu0 %v514, 113
      %v658 = vpop.permute.xlu0 %657
      %659 = vrot.lane.b32.xlu0 %v515, 113
      %v660 = vpop.permute.xlu0 %659
      %vm661 = vcmp.lt.s32.totalorder %v521, 113
      %v662 = vsel %vm661, %v658, %v660
      %v663 = vsel %vm661, %v660, %v658
      %s664 = scalar_lea.vmem %s9, 5
      %v665 = vld [vmem:[%s664] ss:$8 sm:$0x3]
      %v667 = vlaneseq
      %v668 = vshrl.u32 %v667, 7
      %v669 = vsub.s32 0, %v668
      %v670 = vrot.slane %v665, %v669
      %v671 = vlaneseq
      %v672 = vshrl.u32 %v671, 7
      %v673 = vsub.s32 1, %v672
      %v674 = vrot.slane %v665, %v673
      %v677 = vmul.f32 %v662, %v670
      %v678 = vmul.f32 %v663, %v674
      %679 = vst [vmem:[#allocation2 + $0x30] sm:$0xf] %v677
      %680 = vst [vmem:[#allocation2 + $0x38] sm:$0xf] %v678
      %681 = vrot.lane.b32.xlu0 %v514, 112
      %v682 = vpop.permute.xlu0 %681
      %683 = vrot.lane.b32.xlu0 %v515, 112
      %v684 = vpop.permute.xlu0 %683
      %vm685 = vcmp.lt.s32.totalorder %v521, 112
      %v686 = vsel %vm685, %v682, %v684
      %v687 = vsel %vm685, %v684, %v682
      %s688 = scalar_lea.vmem %s9, 6
      %v689 = vld [vmem:[%s688] ss:$8 sm:$0x3]
      %v691 = vlaneseq
      %v692 = vshrl.u32 %v691, 7
      %v693 = vsub.s32 0, %v692
      %v694 = vrot.slane %v689, %v693
      %v695 = vlaneseq
      %v696 = vshrl.u32 %v695, 7
      %v697 = vsub.s32 1, %v696
      %v698 = vrot.slane %v689, %v697
      %v701 = vmul.f32 %v686, %v694
      %v702 = vmul.f32 %v687, %v698
      %v705 = vrot.slane %v701, 4
      %v706 = vrot.slane %v702, 4
      %709 = vst [vmem:[#allocation2 + $0x30] sm:$0xf0] %v705
      %710 = vst [vmem:[#allocation2 + $0x38] sm:$0xf0] %v706
      %711 = vrot.lane.b32.xlu0 %v514, 111
      %v712 = vpop.permute.xlu0 %711
      %713 = vrot.lane.b32.xlu0 %v515, 111
      %v714 = vpop.permute.xlu0 %713
      %vm715 = vcmp.lt.s32.totalorder %v521, 111
      %v716 = vsel %vm715, %v712, %v714
      %v717 = vsel %vm715, %v714, %v712
      %s718 = scalar_lea.vmem %s9, 7
      %v719 = vld [vmem:[%s718] ss:$8 sm:$0x3]
      %v721 = vlaneseq
      %v722 = vshrl.u32 %v721, 7
      %v723 = vsub.s32 0, %v722
      %v724 = vrot.slane %v719, %v723
      %v725 = vlaneseq
      %v726 = vshrl.u32 %v725, 7
      %v727 = vsub.s32 1, %v726
      %v728 = vrot.slane %v719, %v727
      %v731 = vmul.f32 %v716, %v724
      %v732 = vmul.f32 %v717, %v728
      %733 = vst [vmem:[#allocation2 + $0x40] sm:$0xf] %v731
      %734 = vst [vmem:[#allocation2 + $0x48] sm:$0xf] %v732
      %v735 = vld [vmem:[%s5] sm:$0x3]
      %v736 = vld [vmem:[#allocation2] sm:$0xff]
      %v737 = vld [vmem:[#allocation2 + $0x8] sm:$0xff]
      %v738 = vld [vmem:[#allocation2 + $0x10] sm:$0xff]
      %v739 = vld [vmem:[#allocation2 + $0x18] sm:$0xff]
      %v740 = vld [vmem:[#allocation2 + $0x20] sm:$0xff]
      %v741 = vld [vmem:[#allocation2 + $0x28] sm:$0xff]
      %v742 = vld [vmem:[#allocation2 + $0x30] sm:$0xff]
      %v743 = vld [vmem:[#allocation2 + $0x38] sm:$0xff]
      %v744 = vld [vmem:[#allocation2 + $0x40] sm:$0xf]
      %v745 = vld [vmem:[#allocation2 + $0x48] sm:$0xf]
      %v746 = vpack.c.bf16 %v738, %v736
      %v747 = vpack.c.bf16 %v739, %v737
      %v748 = vpack.c.bf16 %v742, %v740
      %v749 = vpack.c.bf16 %v743, %v741
      %v750 = vpack.c.bf16 %v744, %v744
      %v751 = vpack.c.bf16 %v745, %v745
      %v752 = vld [vmem:[%s6] sm:$0xf]
      %754 = vset.pattern.permute.xlu0 0
      %755 = vperm.xlu0 %754, %v752
      %v756 = vpop.permute.xlu0 %755
      %vm758 = vcmask 293888
      %v760 = vsel %vm758, %v735, 0
      %v763 = vsel %vm456, %v750, 0
      %v766 = vsel %vm456, %v751, 0
      %768 = vmatprep.subr.bf16.mxu0 %v747
      %769 = vmatpush1.bf16.msra.mxu0 %v746
      %770 = vmatprep.subr.bf16.mxu0 %v749
      %771 = vmatpush1.bf16.msra.mxu0 %v748
      %772 = vmatprep.subr.bf16.mxu0 %v766
      %773 = vmatpush1.bf16.msra.mxu0 %v763
      %774 = vmatprep.subr.bf16.mxu0 0
      %775 = vmatpush1.bf16.msra.mxu0 0
      %776 = vmatprep.subr.bf16.mxu0 0
      %777 = vmatpush1.bf16.msra.mxu0 0
      %778 = vmatprep.subr.bf16.mxu0 0
      %779 = vmatpush1.bf16.msra.mxu0 0
      %780 = vmatprep.subr.bf16.mxu0 0
      %781 = vmatpush1.bf16.msra.mxu0 0
      %782 = vmatprep.subr.bf16.mxu0 0
      %783 = vmatpush1.bf16.msra.mxu0 0
      %784 = vmatprep.subr.bf16.mxu0 0
      %785 = vmatpush1.bf16.msra.mxu0 0
      %786 = vmatprep.subr.bf16.mxu0 0
      %787 = vmatpush1.bf16.msra.mxu0 0
      %788 = vmatprep.subr.bf16.mxu0 0
      %789 = vmatpush1.bf16.msra.mxu0 0
      %790 = vmatprep.subr.bf16.mxu0 0
      %791 = vmatpush1.bf16.msra.mxu0 0
      %792 = vmatprep.subr.bf16.mxu0 0
      %793 = vmatpush1.bf16.msra.mxu0 0
      %794 = vmatprep.subr.bf16.mxu0 0
      %795 = vmatpush1.bf16.msra.mxu0 0
      %796 = vmatprep.subr.bf16.mxu0 0
      %797 = vmatpush1.bf16.msra.mxu0 0
      %798 = vmatprep.subr.bf16.mxu0 0
      %799 = vmatpush1.bf16.msra.mxu0 0
      %800 = vmatprep.mubr.bf16.mxu0 0
      %801 = vmatmul.mubr.bf16.gmra.mrb[0].mxu0 %v760
      %v802 = vpop.f32.mrb[0].mxu0
      %v803 = vadd.f32 %v756, %v802
      %v804 = vpop.f32.mrb[0].mxu0
      %v805 = vadd.f32 %v756, %v804
      %v806 = vpop.f32.mrb[0].mxu0
      %v807 = vpop.f32.mrb[0].mxu0
      %808 = vdwg.mxu0
      %v809 = vsub.f32 0.0, %v803
      %v810 = vsub.f32 0.0, %v805
      %v811 = vmul.f32 %v809, 1.442695
      %v812 = vpow.pop %v811
      %v813 = vmul.f32 %v810, 1.442695
      %v814 = vpow.pop %v813
      %v815 = vadd.f32 %v812, 1.0
      %v816 = vadd.f32 %v814, 1.0
      %v817 = vrcp.pop %v815
      %v818 = vrcp.pop %v816
      %v819 = vmul.f32 %v803, %v817
      %v820 = vmul.f32 %v805, %v818
      %v821 = vadd.f32 %v434, %v819
      %v822 = vadd.f32 %v435, %v820
      %v823 = vpack.c.bf16 %v821, %v821
      %v824 = vpack.c.bf16 %v822, %v822
      %v827 = vunpack.c.l.b16 %v823
      %v828 = vunpack.c.l.b16 %v824
      %v829 = vpack.c.b16 %v828, %v827
      %831 = vst [vmem:[#allocation3] sm:$0x33] %v829
      %v832 = vld [vmem:[%s7] sm:$0xf]
      %v833 = vld [vmem:[#allocation3] sm:$0xff]
      %v834 = vld [vmem:[%s8] sm:$0xff]
      %836 = vset.pattern.permute.xlu0 0
      %837 = vperm.xlu0 %836, %v834
      %v838 = vpop.permute.xlu0 %837
      %v841 = vunpack.c.l.b16 %v833
      %v842 = vunpack.c.h.b16 %v833
      %v843 = vpack.c.b16 %v841, %v841
      %v844 = vpack.c.b16 %v842, %v842
      %v846 = vsel %vm372, %v832, 0
      %v849 = vsel %vm376, %v843, 0
      %v852 = vsel %vm376, %v844, 0
      %854 = vmatprep.subr.bf16.mxu0 %v852
      %855 = vmatpush1.bf16.msra.mxu0 %v849
      %856 = vmatprep.subr.bf16.mxu0 0
      %857 = vmatpush1.bf16.msra.mxu0 0
      %858 = vmatprep.subr.bf16.mxu0 0
      %859 = vmatpush1.bf16.msra.mxu0 0
      %860 = vmatprep.subr.bf16.mxu0 0
      %861 = vmatpush1.bf16.msra.mxu0 0
      %862 = vmatprep.subr.bf16.mxu0 0
      %863 = vmatpush1.bf16.msra.mxu0 0
      %864 = vmatprep.subr.bf16.mxu0 0
      %865 = vmatpush1.bf16.msra.mxu0 0
      %866 = vmatprep.subr.bf16.mxu0 0
      %867 = vmatpush1.bf16.msra.mxu0 0
      %868 = vmatprep.subr.bf16.mxu0 0
      %869 = vmatpush1.bf16.msra.mxu0 0
      %870 = vmatprep.subr.bf16.mxu0 0
      %871 = vmatpush1.bf16.msra.mxu0 0
      %872 = vmatprep.subr.bf16.mxu0 0
      %873 = vmatpush1.bf16.msra.mxu0 0
      %874 = vmatprep.subr.bf16.mxu0 0
      %875 = vmatpush1.bf16.msra.mxu0 0
      %876 = vmatprep.subr.bf16.mxu0 0
      %877 = vmatpush1.bf16.msra.mxu0 0
      %878 = vmatprep.subr.bf16.mxu0 0
      %879 = vmatpush1.bf16.msra.mxu0 0
      %880 = vmatprep.subr.bf16.mxu0 0
      %881 = vmatpush1.bf16.msra.mxu0 0
      %882 = vmatprep.subr.bf16.mxu0 0
      %883 = vmatpush1.bf16.msra.mxu0 0
      %884 = vmatprep.subr.bf16.mxu0 0
      %885 = vmatpush1.bf16.msra.mxu0 0
      %886 = vmatprep.mubr.bf16.mxu0 0
      %887 = vmatmul.mubr.bf16.gmra.mrb[0].mxu0 %v846
      %v888 = vpop.f32.mrb[0].mxu0
      %v889 = vadd.f32 %v838, %v888
      %v890 = vpop.f32.mrb[0].mxu0
      %v891 = vadd.f32 %v838, %v890
      %v892 = vpop.f32.mrb[0].mxu0
      %v893 = vpop.f32.mrb[0].mxu0
      %894 = vdwg.mxu0
      %v895 = vsub.f32 0.0, %v889
      %v896 = vsub.f32 0.0, %v891
      %v897 = vmul.f32 %v895, 1.442695
      %v898 = vpow.pop %v897
      %v899 = vmul.f32 %v896, 1.442695
      %v900 = vpow.pop %v899
      %v901 = vadd.f32 %v898, 1.0
      %v902 = vadd.f32 %v900, 1.0
      %v903 = vrcp.pop %v901
      %v904 = vrcp.pop %v902
      %v905 = vmul.f32 %v889, %v903
      %v906 = vmul.f32 %v891, %v904
      %907 = vst [vmem:[%s359] sm:$0xff] %v905
      %908 = vst [vmem:[%s359 + $0x8] sm:$0xff] %v906
      %p909 = scmp.lt.s32.totalorder %s21, 1
      %s910 = scalar_select %p909, %s21, 1
      %s911 = smul.addr %s910, 2
      %s912 = smul.addr %s911, 8
      %s913 = scalar_lea.vmem %s10, %s912
      // Predicated region
      $region61: #{c3_forward_pallas.1} parent=59 // pred_check
        %p914 = pneg %p254
      $region62: #{c3_forward_pallas.1} parent=59 // pred_check_branch
        %916 = sbr.rel (%p914) target = $region64
      $region63: #{c3_forward_pallas.1} parent=59 // pred_region
        _
      $region64: #{c3_forward_pallas.1} parent=59 // pred_fallthru
        _
    $region60: #{c3_forward_pallas.1} parent=5 // pred_fallthru
      _
    %p917 = scmp.le.s32.totalorder 2, %s16
    // Predicated region
    $region65: #{c3_forward_pallas.1} parent=5 // pred_check
      %p918 = pneg %p917
    $region66: #{c3_forward_pallas.1} parent=5 // pred_check_branch
      %920 = sbr.rel (%p918) target = $region68
    $region67: #{c3_forward_pallas.1} parent=5 // pred_region
      %s921 = ssub.s32 %s16, 2
      // Predicated region
      $region69: #{c3_forward_pallas.1} parent=67 // pred_check
        %p922 = pneg %p260
      $region70: #{c3_forward_pallas.1} parent=67 // pred_check_branch
        %924 = sbr.rel (%p922) target = $region72
      $region71: #{c3_forward_pallas.1} parent=67 // pred_region
        %p925 = scmp.lt.s32.totalorder %s22, 1
        %s926 = scalar_select %p925, %s22, 1
        %s927 = smul.addr %s926, 2
        %s928 = smul.addr %s927, 8
        %s929 = scalar_lea.vmem %s10, %s928
      $region72: #{c3_forward_pallas.1} parent=67 // pred_fallthru
        _
    $region68: #{c3_forward_pallas.1} parent=5 // pred_fallthru
      _
  $region6: #{c3_forward_pallas.1} parent=0 // loop_footer
    %s20 = sadd.s32 1, %s16
  $region7: #{c3_forward_pallas.1} parent=0 // loop_footer_branch
    %15 = sbr.rel target = $region3
  $region8: #{c3_forward_pallas.1} parent=0 // loop_exit
    _

</llo_original>
